<compile_context>
chip_gen: v6e
topology: v6e:2x2x1
jax: 0.10.0
libtpu: 0.0.40
codegen_flags: <defaults>
</compile_context>

<pallas_src>
import math

import jax
import jax.numpy as jnp
from jax.experimental import pallas as pl
from jax.experimental.pallas import tpu as pltpu


# --------------------------------------------------------------------------- #
# Shared in-kernel epilogue                                                    #
# --------------------------------------------------------------------------- #
def _mask_softmax_rows(att, adj, n_valid):
    """Masked row-softmax matching the reference's additive -9e15 mask.

    Lane-padded columns (index >= n_valid) are excluded exactly (their exp is
    0), so fully isolated rows still produce the reference's uniform 1/N.
    """
    att = jnp.where(adj > 1e-5, att, jnp.float32(-9.0e15))
    col = jax.lax.broadcasted_iota(jnp.int32, att.shape, 1)
    att = jnp.where(col < n_valid, att, jnp.float32(-jnp.inf))
    m = jnp.max(att, axis=-1, keepdims=True)
    e = jnp.exp(att - m)                       # padded cols: exp(-inf) == 0
    # exact reciprocal on the narrow (tm, 1) column, full-width VPU multiply
    inv = 1.0 / jnp.sum(e, axis=-1, keepdims=True)
    return e * inv


# --------------------------------------------------------------------------- #
# Kernels                                                                      #
# --------------------------------------------------------------------------- #
def dense_att_factored_kernel(nvalid_ref, wadj_ref, l_ref, r_ref, adj_ref, out_ref):
    # nvalid_ref : SMEM (1,) i32   number of real columns
    # wadj_ref   : SMEM (1,) f32   adjacency weight of the Linear
    # l_ref      : (tm, 1)   f32   l[i] = x[i] @ w_l + bias   (sublane-varying)
    # r_ref      : (1, Np)   f32   r[j] = x[j] @ w_r          (lane-varying)
    # adj_ref    : (tm, Np)  f32   dense adjacency (lane-dense)
    # out_ref    : (tm, Np)  f32   softmaxed attention rows
    adj = adj_ref[...]
    att = l_ref[...] + r_ref[...]              # (tm,1)+(1,Np) broadcast add
    att = att + adj * wadj_ref[0]
    out_ref[...] = _mask_softmax_rows(att, adj, nvalid_ref[0]).astype(out_ref.dtype)


def dense_att_pairwise_kernel(nvalid_ref, scal_ref, w_ref, xl_ref, xr_ref,
                              adj_ref, out_ref):
    # nvalid_ref : SMEM (1,) i32
    # scal_ref   : SMEM (2,) f32   [w_adj, bias]
    # w_ref      : (2, D)    f32   row 0 = w_l, row 1 = w_r
    # xl_ref/xr_ref : (tm, Np, D)  pairwise node features (bf16/f32)
    # adj_ref    : (tm, Np)  f32
    # out_ref    : (tm, Np)  f32
    xl = xl_ref[...].astype(jnp.float32)
    xr = xr_ref[...].astype(jnp.float32)
    w = w_ref[...]
    adj = adj_ref[...]
    # Fused VPU multiply-add + a single XLU lane reduce (not two).
    att = jnp.sum(xl * w[0] + xr * w[1], axis=-1)
    att = att + adj * scal_ref[0] + scal_ref[1]
    out_ref[...] = _mask_softmax_rows(att, adj, nvalid_ref[0]).astype(out_ref.dtype)


# --------------------------------------------------------------------------- #
# Tiling / VMEM budgeting helpers                                              #
# --------------------------------------------------------------------------- #
def _round_up(x, m):
    return -(-x // m) * m


def _vmem_limit_bytes():
    """Per-generation VMEM limit: ~3/4 of physical.

    -> ~96 MiB on v5e/v6e (128 MiB physical), ~48 MiB on v7x (64 MiB per TC).
    """
    try:
        cap = int(pltpu.get_tpu_info().vmem_capacity_bytes)
    except Exception:
        cap = 64 << 20          # conservative fallback (v7x per-TC VMEM)
    return min((cap * 3) // 4, 112 << 20)


def _pick_row_tiling(n_rows, per_row_bytes, vmem_limit):
    """Choose (tm, padded_rows, grid_steps).

    per_row_bytes must already include double-buffering. tm is a multiple of 8
    (sublane rule), sized so the pipelined footprint stays ~60% of vmem_limit,
    and when more than one step is needed the step count is made even so the
    'parallel' row axis shards evenly across v7x's two TensorCores.
    """
    budget = int(vmem_limit * 0.6)
    tm = budget // max(per_row_bytes, 1)
    tm = int(max(8, min(tm, _round_up(n_rows, 8))))
    tm -= tm % 8
    steps = -(-n_rows // tm)
    if steps > 1 and steps % 2 == 1:
        steps += 1
        tm = _round_up(-(-n_rows // steps), 8)
    return tm, steps * tm, steps


# --------------------------------------------------------------------------- #
# Wrappers                                                                     #
# --------------------------------------------------------------------------- #
def _dense_att_factored(x_left, x_right, adj2d, w_flat, bias):
    """Fast path: x_left/x_right are per-node features (N, D)."""
    n, d = x_left.shape
    w_l, w_r, w_adj = w_flat[:d], w_flat[d:2 * d], w_flat[2 * d]
    # Tiny per-node projections (exact f32 multiply + reduce; bias folded in).
    l = jnp.sum(x_left.astype(jnp.float32) * w_l, axis=-1) + jnp.float32(bias)
    r = jnp.sum(x_right.astype(jnp.float32) * w_r, axis=-1)

    np_col = _round_up(n, 128)                       # lane-dense, unmasked vst
    vmem_limit = _vmem_limit_bytes()
    # double-buffered adj + out blocks + lane-padded (tm,1) l column
    per_row = 2 * (2 * np_col * 4 + 128 * 4)
    tm, np_row, steps = _pick_row_tiling(n, per_row, vmem_limit)

    l_col = jnp.pad(l[:, None], ((0, np_row - n), (0, 0)))
    r_row = jnp.pad(r[None, :], ((0, 0), (0, np_col - n)))
    adj_p = jnp.pad(adj2d, ((0, np_row - n), (0, np_col - n)))
    nvalid = jnp.array([n], jnp.int32)
    wadj = w_adj.reshape(1).astype(jnp.float32)

    cost = pl.CostEstimate(
        flops=8 * np_row * np_col,
        transcendentals=np_row * np_col,
        bytes_accessed=2 * np_row * np_col * 4)

    att = pl.pallas_call(
        dense_att_factored_kernel,
        out_shape=jax.ShapeDtypeStruct((np_row, np_col), jnp.float32),
        grid_spec=pl.GridSpec(
            grid=(steps,),
            in_specs=[
                pl.BlockSpec(memory_space=pltpu.MemorySpace.SMEM),   # nvalid
                pl.BlockSpec(memory_space=pltpu.MemorySpace.SMEM),   # w_adj
                pl.BlockSpec((tm, 1), lambda i: (i, 0)),             # l column
                pl.BlockSpec((1, np_col), lambda i: (0, 0)),         # r row
                pl.BlockSpec((tm, np_col), lambda i: (i, 0)),        # adj
            ],
            out_specs=pl.BlockSpec((tm, np_col), lambda i: (i, 0)),
        ),
        compiler_params=pltpu.CompilerParams(
            dimension_semantics=("parallel",),
            vmem_limit_bytes=vmem_limit),
        cost_estimate=cost,
    )(nvalid, wadj, l_col, r_row, adj_p)
    return att[:n, :n, None]


def _dense_att_pairwise(x_left, x_right, adj2d, w_flat, bias):
    """General path: fully materialized pairwise features (N, N, D)."""
    n, n2, d = x_left.shape
    assert n == n2
    w_pair = jnp.stack([w_flat[:d], w_flat[d:2 * d]])            # (2, D) f32
    scal = jnp.stack([w_flat[2 * d], jnp.asarray(bias, jnp.float32)])

    np_col = _round_up(n, 128)
    itemsize = x_left.dtype.itemsize
    d_vmem = _round_up(d, 128)        # feature axis lane-pads to 128 in VMEM
    vmem_limit = _vmem_limit_bytes()
    # double-buffered: xl + xr feature blocks (lane-padded) + adj + out
    per_row = 2 * (2 * np_col * d_vmem * itemsize + 2 * np_col * 4)
    tm, np_row, steps = _pick_row_tiling(n, per_row, vmem_limit)
    # TODO(synk): online-softmax column tiling when even tm=8 rows exceed VMEM.

    # Production callers should provide pre-padded (and ideally (N, D, N)
    # feature-on-sublane) layouts; padding here is demo plumbing.
    xl = jnp.pad(x_left, ((0, np_row - n), (0, np_col - n), (0, 0)))
    xr = jnp.pad(x_right, ((0, np_row - n), (0, np_col - n), (0, 0)))
    adj_p = jnp.pad(adj2d, ((0, np_row - n), (0, np_col - n)))
    nvalid = jnp.array([n], jnp.int32)

    cost = pl.CostEstimate(
        flops=np_row * np_col * (4 * d + 8),
        transcendentals=np_row * np_col,
        bytes_accessed=2 * np_row * np_col * d * itemsize + 2 * np_row * np_col * 4)

    att = pl.pallas_call(
        dense_att_pairwise_kernel,
        out_shape=jax.ShapeDtypeStruct((np_row, np_col), jnp.float32),
        grid_spec=pl.GridSpec(
            grid=(steps,),
            in_specs=[
                pl.BlockSpec(memory_space=pltpu.MemorySpace.SMEM),     # nvalid
                pl.BlockSpec(memory_space=pltpu.MemorySpace.SMEM),     # scalars
                pl.BlockSpec((2, d), lambda i: (0, 0)),                # w_l/w_r
                pl.BlockSpec((tm, np_col, d), lambda i: (i, 0, 0)),    # x_left
                pl.BlockSpec((tm, np_col, d), lambda i: (i, 0, 0)),    # x_right
                pl.BlockSpec((tm, np_col), lambda i: (i, 0)),          # adj
            ],
            out_specs=pl.BlockSpec((tm, np_col), lambda i: (i, 0)),
        ),
        compiler_params=pltpu.CompilerParams(
            dimension_semantics=("parallel",),
            vmem_limit_bytes=vmem_limit),
        cost_estimate=cost,
    )(nvalid, scal, w_pair, xl, xr, adj_p)
    return att[:n, :n, None]


@jax.jit
def dense_att(x_left, x_right, adj, weight, bias):
    """DenseAtt forward (eval mode, edge_attr=None).

    x_left / x_right:
      * (N, D)     per-node features (HGCN usage; fast factorized path), or
      * (N, N, D)  fully materialized pairwise features (literal module path).
    adj: (N, N, 1) or (N, N);  weight: (2D+1,) or (1, 2D+1);  bias: scalar.
    Returns (N, N, 1) float32 softmaxed attention.
    """
    w_flat = jnp.reshape(weight, (-1,)).astype(jnp.float32)
    adj2d = adj.reshape(adj.shape[0], adj.shape[1]).astype(jnp.float32)
    if x_left.ndim == 2:
        return _dense_att_factored(x_left, x_right, adj2d, w_flat, bias)
    return _dense_att_pairwise(x_left, x_right, adj2d, w_flat, bias)


# --------------------------------------------------------------------------- #
# Pure-JAX reference (mirrors the PyTorch forward, eval mode)                  #
# --------------------------------------------------------------------------- #
def reference_dense_att(x_left, x_right, adj, weight, bias):
    w = jnp.reshape(weight, (-1,)).astype(jnp.float32)          # (2D+1,)
    x_cat = jnp.concatenate(
        [x_left.astype(jnp.float32), x_right.astype(jnp.float32),
         adj.astype(jnp.float32)], axis=-1)                     # (N, N, 2D+1)
    att = jnp.sum(x_cat * w, axis=-1) + jnp.float32(bias)
    pad_mask = 1.0 - (adj[..., 0] > 1e-5).astype(jnp.float32)
    att = att + (-9.0e15) * pad_mask
    att = jax.nn.softmax(att, axis=-1)
    return att[..., None]


if __name__ == "__main__":
    N = 16          # number of nodes (pairwise attention is N x N)
    D = 32          # in_features
    EDGE_DIM = 1

    key = jax.random.PRNGKey(0)
    k1, k2, k3, k4 = jax.random.split(key, 4)

    # Per-node features (the HGCN caller never materializes the pairwise ones).
    x = jax.random.normal(k1, (N, D), dtype=jnp.float32)
    # Sparse-ish adjacency in [0, 1): ~50% entries zeroed (masked out).
    adj_vals = jax.random.uniform(k2, (N, N, 1), dtype=jnp.float32)
    adj_mask = (jax.random.uniform(k3, (N, N, 1)) > 0.5).astype(jnp.float32)
    adj = adj_vals * adj_mask

    # att_mlp = nn.Linear(2*D + 1, 1, bias=True), PyTorch-style init.
    fan_in = 2 * D + EDGE_DIM
    bound = 1.0 / math.sqrt(fan_in)
    weight = jax.random.uniform(k4, (fan_in,), dtype=jnp.float32,
                                minval=-bound, maxval=bound)
    bias = jnp.float32(0.01)

    # ---- fast factorized path: per-node features in, no (N,N,D) tensors ----
    out_fast = jax.block_until_ready(dense_att(x, x, adj, weight, bias))
    ref_fast = reference_dense_att(
        jnp.broadcast_to(x[:, None, :], (N, N, D)),
        jnp.broadcast_to(x[None, :, :], (N, N, D)), adj, weight, bias)

    # ---- general pairwise path: materialized bf16 (N,N,D) features ----------
    x_left = jnp.broadcast_to(x[:, None, :], (N, N, D)).astype(jnp.bfloat16)
    x_right = jnp.broadcast_to(x[None, :, :], (N, N, D)).astype(jnp.bfloat16)
    out_pair = jax.block_until_ready(dense_att(x_left, x_right, adj, weight, bias))
    ref_pair = reference_dense_att(x_left, x_right, adj, weight, bias)

    assert out_fast.shape == (N, N, 1) and out_pair.shape == (N, N, 1)
    assert bool(jnp.allclose(out_fast, ref_fast, atol=1e-5, rtol=1e-5)), \
        "factorized path mismatch vs reference"
    assert bool(jnp.allclose(out_pair, ref_pair, atol=1e-5, rtol=1e-5)), \
        "pairwise path mismatch vs reference"

    print("KERNEL_OK")
</pallas_src>

<mosaic_0001>
module attributes {stable_mosaic.version = 11 : i64} {
  func.func @dense_att_factored_kernel(%arg0: i32, %arg1: memref<1xi32, #tpu.memory_space<smem>>, %arg2: memref<1xf32, #tpu.memory_space<smem>>, %arg3: memref<16x1xf32, #tpu.memory_space<vmem>>, %arg4: memref<1x128xf32, #tpu.memory_space<vmem>>, %arg5: memref<16x128xf32, #tpu.memory_space<vmem>>, %arg6: memref<16x128xf32, #tpu.memory_space<vmem>>) attributes {dimension_semantics = [#tpu.dimension_semantics<parallel>], iteration_bounds = array<i64: 1>, scalar_prefetch = 0 : i64, scratch_operands = 0 : i64, tpu.core_type = #tpu.core_type<tc>, window_params = [{transform_indices = @transform_0, window_bounds = array<i64: 1>}, {transform_indices = @transform_1, window_bounds = array<i64: 1>}, {transform_indices = @transform_2, window_bounds = array<i64: 16, 1>}, {pipeline_mode = #tpu.pipeline_mode<synchronous>, transform_indices = @transform_3, window_bounds = array<i64: 1, 128>}, {transform_indices = @transform_4, window_bounds = array<i64: 16, 128>}, {transform_indices = @transform_5, window_bounds = array<i64: 16, 128>}]} {
    %c0 = arith.constant 0 : index
    %c0_0 = arith.constant 0 : index
    %0 = vector.load %arg5[%c0, %c0_0] : memref<16x128xf32, #tpu.memory_space<vmem>>, vector<16x128xf32>
    %c0_1 = arith.constant 0 : index
    %c0_2 = arith.constant 0 : index
    %1 = vector.load %arg3[%c0_1, %c0_2] : memref<16x1xf32, #tpu.memory_space<vmem>>, vector<16x1xf32>
    %c0_3 = arith.constant 0 : index
    %c0_4 = arith.constant 0 : index
    %2 = vector.load %arg4[%c0_3, %c0_4] : memref<1x128xf32, #tpu.memory_space<vmem>>, vector<1x128xf32>
    %3 = vector.broadcast %1 : vector<16x1xf32> to vector<16x128xf32>
    %4 = vector.broadcast %2 : vector<1x128xf32> to vector<16x128xf32>
    %5 = arith.addf %3, %4 : vector<16x128xf32>
    %c0_5 = arith.constant 0 : index
    %6 = memref.load %arg2[%c0_5] : memref<1xf32, #tpu.memory_space<smem>>
    %7 = vector.broadcast %6 : f32 to vector<16x128xf32>
    %8 = arith.mulf %0, %7 : vector<16x128xf32>
    %9 = arith.addf %5, %8 : vector<16x128xf32>
    %c0_6 = arith.constant 0 : index
    %10 = memref.load %arg1[%c0_6] : memref<1xi32, #tpu.memory_space<smem>>
    %cst = arith.constant 9.99999974E-6 : f32
    %11 = vector.broadcast %cst : f32 to vector<16x128xf32>
    %12 = arith.cmpf ogt, %0, %11 : vector<16x128xf32>
    %cst_7 = arith.constant -9.000000e+15 : f32
    %13 = vector.broadcast %cst_7 : f32 to vector<16x128xf32>
    %14 = arith.select %12, %9, %13 : vector<16x128xi1>, vector<16x128xf32>
    %15 = tpu.iota {dimensions = array<i32: 1>} : vector<16x128xi32>
    %16 = vector.broadcast %10 : i32 to vector<16x128xi32>
    %17 = arith.cmpi slt, %15, %16 : vector<16x128xi32>
    %cst_8 = arith.constant 0xFF800000 : f32
    %18 = vector.broadcast %cst_8 : f32 to vector<16x128xf32>
    %19 = arith.select %17, %14, %18 : vector<16x128xi1>, vector<16x128xf32>
    %cst_9 = arith.constant dense<0xFF800000> : vector<16xf32>
    %20 = vector.multi_reduction <maximumf>, %19, %cst_9 [1] : vector<16x128xf32> to vector<16xf32>
    %21 = vector.shape_cast %20 : vector<16xf32> to vector<16x1xf32>
    %22 = vector.broadcast %21 : vector<16x1xf32> to vector<16x128xf32>
    %23 = arith.subf %19, %22 : vector<16x128xf32>
    %24 = math.exp %23 : vector<16x128xf32>
    %cst_10 = arith.constant dense<0.000000e+00> : vector<16xf32>
    %25 = vector.multi_reduction <add>, %24, %cst_10 [1] : vector<16x128xf32> to vector<16xf32>
    %26 = vector.shape_cast %25 : vector<16xf32> to vector<16x1xf32>
    %cst_11 = arith.constant 1.000000e+00 : f32
    %27 = vector.broadcast %cst_11 : f32 to vector<16x1xf32>
    %28 = arith.divf %27, %26 : vector<16x1xf32>
    %29 = vector.broadcast %28 : vector<16x1xf32> to vector<16x128xf32>
    %30 = arith.mulf %24, %29 : vector<16x128xf32>
    %c0_12 = arith.constant 0 : index
    %c0_13 = arith.constant 0 : index
    %31 = vector.load %arg6[%c0_12, %c0_13] : memref<16x128xf32, #tpu.memory_space<vmem>>, vector<16x128xf32>
    tpu.vector_store %arg6[%c0_12, %c0_13], %30 {strides = array<i32>} : memref<16x128xf32, #tpu.memory_space<vmem>>, vector<16x128xf32>,
    return
  }
  func.func @transform_0(%arg0: i32) -> i32 {
    %c0_i32 = arith.constant 0 : i32
    %c0_i32_0 = arith.constant 0 : i32
    return %c0_i32 : i32
  }
  func.func @transform_1(%arg0: i32) -> i32 {
    %c0_i32 = arith.constant 0 : i32
    %c0_i32_0 = arith.constant 0 : i32
    return %c0_i32 : i32
  }
  func.func @transform_2(%arg0: i32) -> (i32, i32) {
    %c0_i32 = arith.constant 0 : i32
    %c0_i32_0 = arith.constant 0 : i32
    return %arg0, %c0_i32 : i32, i32
  }
  func.func @transform_3(%arg0: i32) -> (i32, i32) {
    %c0_i32 = arith.constant 0 : i32
    %c0_i32_0 = arith.constant 0 : i32
    %c0_i32_1 = arith.constant 0 : i32
    return %c0_i32, %c0_i32_0 : i32, i32
  }
  func.func @transform_4(%arg0: i32) -> (i32, i32) {
    %c0_i32 = arith.constant 0 : i32
    %c0_i32_0 = arith.constant 0 : i32
    return %arg0, %c0_i32 : i32, i32
  }
  func.func @transform_5(%arg0: i32) -> (i32, i32) {
    %c0_i32 = arith.constant 0 : i32
    %c0_i32_0 = arith.constant 0 : i32
    return %arg0, %c0_i32 : i32, i32
  }
}

</mosaic_0001>

<llo_original>
// kernel: dense_att.1
$region0: #{dense_att.1}
  #allocation0 [shape = 'u32[]', space=smem, size = 0x4, offset = 0x4, fixed_abs, tag = 'smem constant byte address 0x4 - core index']
  #allocation1 [shape = 'u32[144,128]{1,0:T(1,128)}', space=vmem, size = 0x12000, scoped, tag = 'internal scratch']
  #allocation2 [shape = 's32[1]{0:T(128)S(6)}', space=smem, size = 0x200, scoped, tag = 'scoped memory for dense_att.1']
  #allocation3 [shape = 'f32[1]{0:T(128)S(6)}', space=smem, size = 0x200, scoped, tag = 'scoped memory for dense_att.1']
  %s0 = inlined_call_operand.<no memory space> [shape: s32[1], index: 0, kind: input, shape index: {}]
  %s1 = inlined_call_operand.<no memory space> [shape: f32[1], index: 1, kind: input, shape index: {}]
  %s2 = inlined_call_operand.vmem [shape: f32[16,1], index: 2, kind: input, shape index: {}]
  %s3 = inlined_call_operand.vmem [shape: f32[1,128], index: 3, kind: input, shape index: {}]
  %s4 = inlined_call_operand.vmem [shape: f32[16,128], index: 4, kind: input, shape index: {}]
  %s5 = inlined_call_operand.hbm [shape: f32[16,128], index: 5, kind: output, shape index: {}]
  %s6 = sld [smem:[#allocation0]]
  $region30: #{dense_att.1} parent=0
    _
  %s8 = ssub.s32 1, %s6
  %s9 = scalar_select 0, %s8, %s6
  %10 = sst [smem:[#allocation2]] %s0
  %11 = sst [smem:[#allocation3]] %s1
  $region1: #{dense_att.1} parent=0
    #allocation4 [shape = 'u8[8192]{0}', space=vmem, size = 0x2000, scoped, tag = 'output window, operand 0, single buffered']
    #allocation5 [shape = 's32[1]{0}', space=sflag, size = 0x4, scoped, tag = 'scoped memory for dense_att.1']
    %12 = vsyncpa [#allocation5], 0
    // Predicated region
    $region2: #{dense_att.1} parent=1 // pred_check
      _
    $region3: #{dense_att.1} parent=1 // pred_check_branch
      %14 = sbr.rel (0) target = $region5
    $region4: #{dense_att.1} parent=1 // pred_region
      _
    $region5: #{dense_att.1} parent=1 // pred_fallthru
      _
    // Predicated region
    $region6: #{dense_att.1} parent=1 // pred_check
      _
    $region7: #{dense_att.1} parent=1 // pred_check_branch
      %16 = sbr.rel (0) target = $region9
    $region8: #{dense_att.1} parent=1 // pred_region
      _
    $region9: #{dense_att.1} parent=1 // pred_fallthru
      _
    // Predicated region
    $region10: #{dense_att.1} parent=1 // pred_check
      _
    $region11: #{dense_att.1} parent=1 // pred_check_branch
      %18 = sbr.rel (0) target = $region13
    $region12: #{dense_att.1} parent=1 // pred_region
      _
    $region13: #{dense_att.1} parent=1 // pred_fallthru
      _
    // Predicated region
    $region14: #{dense_att.1} parent=1 // pred_check
      _
    $region15: #{dense_att.1} parent=1 // pred_check_branch
      %20 = sbr.rel (0) target = $region17
    $region16: #{dense_att.1} parent=1 // pred_region
      _
    $region17: #{dense_att.1} parent=1 // pred_fallthru
      _
    // Predicated region
    $region18: #{dense_att.1} parent=1 // pred_check
      _
    $region19: #{dense_att.1} parent=1 // pred_check_branch
      %22 = sbr.rel (0) target = $region21
    $region20: #{dense_att.1} parent=1 // pred_region
      _
    $region21: #{dense_att.1} parent=1 // pred_fallthru
      _
    %v23 = vld [vmem:[%s4] sm:$0xff]
    %v24 = vld [vmem:[%s4 + $0x8] sm:$0xff]
    %v25 = vld [vmem:[%s2] sm:$0xff]
    %v26 = vld [vmem:[%s2 + $0x8] sm:$0xff]
    %v27 = vld [vmem:[%s3] sm:$0x1]
    %29 = vset.pattern.permute.xlu0 0
    %30 = vperm.xlu0 %29, %v25
    %v31 = vpop.permute.xlu0 %30
    %34 = vset.pattern.permute.xlu0 0
    %35 = vperm.xlu0 %34, %v26
    %v36 = vpop.permute.xlu0 %35
    %v39 = vlaneseq
    %v40 = vshrl.u32 %v39, 7
    %v41 = vsub.s32 0, %v40
    %v42 = vrot.slane %v27, %v41
    %v44 = vadd.f32 %v31, %v42
    %v45 = vadd.f32 %v36, %v42
    %s46 = sld [smem:[#allocation3]]
    %v47 = vstv %s46
    %v48 = vmul.f32 %v23, %v47
    %v49 = vmul.f32 %v24, %v47
    %v50 = vadd.f32 %v44, %v48
    %v51 = vadd.f32 %v45, %v49
    %s52 = sld [smem:[#allocation2]]
    %vm53 = vcmp.gt.f32.partialorder %v23, 1e-05
    %vm54 = vcmp.gt.f32.partialorder %v24, 1e-05
    %v55 = vsel %vm53, %v50, -9e+15
    %v56 = vsel %vm54, %v51, -9e+15
    %v57 = vlaneseq
    %v58 = vand.u32 %v57, 127
    %v59 = vstv %s52
    %vm60 = vcmp.lt.s32.totalorder %v58, %v59
    %v61 = vsel %vm60, %v55, -inf
    %v62 = vsel %vm60, %v56, -inf
    %63 = vmax.xlane.f32.xlu0 %v61
    %v64 = vpop.xlane.xlu0 %63
    %65 = vmax.xlane.f32.xlu0 %v62
    %v66 = vpop.xlane.xlu0 %65
    %v67 = vsub.f32 %v61, %v64
    %v68 = vsub.f32 %v62, %v66
    %v69 = vmul.f32 %v67, 1.442695
    %v70 = vpow.pop %v69
    %v71 = vmul.f32 %v68, 1.442695
    %v72 = vpow.pop %v71
    %73 = vadd.xlane.f32.xlu0 %v70
    %v74 = vpop.xlane.xlu0 %73
    %75 = vadd.xlane.f32.xlu0 %v72
    %v76 = vpop.xlane.xlu0 %75
    %v77 = vrcp.pop %v74
    %v78 = vmul.f32 1.0, %v77
    %v79 = vrcp.pop %v76
    %v80 = vmul.f32 1.0, %v79
    %v81 = vmul.f32 %v70, %v78
    %v82 = vmul.f32 %v72, %v80
    %83 = vst [vmem:[#allocation4] sm:$0xff] %v81
    %84 = vst [vmem:[#allocation4 + $0x8] sm:$0xff] %v82
    // Predicated region
    $region22: #{dense_att.1} parent=1 // pred_check
      _
    $region23: #{dense_att.1} parent=1 // pred_check_branch
      %86 = sbr.rel (0) target = $region25
    $region24: #{dense_att.1} parent=1 // pred_region
      %s88 = ssub.s32 256, 256
      %89 = vsyncadd [#allocation5], %s88
      %s90 = sshll.u32 [#allocation4], 4
      %s91 = int_to_ptr.vmem [resolvable:$true] %s90
      %96 = dma.vmem_to_hbm [thread:$0]  %s91, 256, %s5, [#allocation5], 128, 128, 8
    $region25: #{dense_att.1} parent=1 // pred_fallthru
      _
    // Predicated region
    $region26: #{dense_att.1} parent=1 // pred_check
      _
    $region27: #{dense_att.1} parent=1 // pred_check_branch
      %98 = sbr.rel (0) target = $region29
    $region28: #{dense_att.1} parent=1 // pred_region
      %99 = dma.done [#allocation5], 256
    $region29: #{dense_att.1} parent=1 // pred_fallthru
      _
    %100 = vsyncpa [#allocation5], 1

</llo_original>
